<compile_context>
chip_gen: v7x
topology: tpu7x:2x2x1
jax: 0.10.0
libtpu: 0.0.40
codegen_flags: <defaults>
</compile_context>

<pallas_src>
import jax
import jax.numpy as jnp
from jax import lax
from jax.experimental import pallas as pl
from jax.experimental.pallas import tpu as pltpu

LANE = 128
MAX_TR = 512  # safe for v5e's 16 MiB scoped VMEM (13 planes x 512 x 128 x 4B x 2 buf)


def _make_kernel(tr, acc_rows, rows_per_image, has_tail):
    """Kernel over one (image, row-tile) grid cell.

    Accumulates 4 partial sums (dice intersection, true*mask, pred*mask,
    weighted geo loss) into the resident per-image output block of shape
    (1, 4, acc_rows, 128).
    """
    f32 = jnp.float32

    if acc_rows == 8:
        # (tr,128) -> stack of tr/8 native vregs -> elementwise VPU adds.
        def red(x):
            return x.reshape(tr // 8, 8, LANE).sum(axis=0)
    else:
        # tiny-tile fallback (tr < 8 or not a multiple of 8)
        def red(x):
            return x.sum(axis=0, keepdims=True)

    def kernel(ytc_ref, ypc_ref, tg_ref, pg_ref, mask_ref, out_ref):
        i = pl.program_id(1)

        @pl.when(i == 0)
        def _init():
            out_ref[...] = jnp.zeros_like(out_ref)

        yt = ytc_ref[0].astype(f32)      # (TR, 128)
        yp = ypc_ref[0].astype(f32)
        m = mask_ref[0].astype(f32)

        # CSE'd mask products.
        ytm = yt * m
        ypm = yp * m
        c_inter = ytm * yp
        c_true = ytm
        c_pred = ypm

        # --- IoU / angle geometry loss (torch.split along channel dim) ---
        d1g = tg_ref[0, 0].astype(f32); d2g = tg_ref[0, 1].astype(f32)
        d3g = tg_ref[0, 2].astype(f32); d4g = tg_ref[0, 3].astype(f32)
        thg = tg_ref[0, 4].astype(f32)
        d1p = pg_ref[0, 0].astype(f32); d2p = pg_ref[0, 1].astype(f32)
        d3p = pg_ref[0, 2].astype(f32); d4p = pg_ref[0, 3].astype(f32)
        thp = pg_ref[0, 4].astype(f32)

        area_gt = (d1g + d3g) * (d2g + d4g)
        area_pred = (d1p + d3p) * (d2p + d4p)
        w_union = jnp.minimum(d2g, d2p) + jnp.minimum(d4g, d4p)
        h_union = jnp.minimum(d1g, d1p) + jnp.minimum(d3g, d3p)
        area_intersect = w_union * h_union
        area_union = area_gt + area_pred - area_intersect
        l_aabb = -jnp.log((area_intersect + 1.0) / (area_union + 1.0))
        l_theta = 1.0 - jnp.cos(thp - thg)
        c_geo = (l_aabb + 20.0 * l_theta) * ytm

        if has_tail:
            # Partial boundary block: rows beyond the image are undefined
            # (may even be NaN) -> select them to exactly zero.
            rows = i * tr + lax.broadcasted_iota(jnp.int32, (tr, LANE), 0)
            valid = rows < rows_per_image
            zero = jnp.zeros((tr, LANE), f32)
            c_inter = jnp.where(valid, c_inter, zero)
            c_true = jnp.where(valid, c_true, zero)
            c_pred = jnp.where(valid, c_pred, zero)
            c_geo = jnp.where(valid, c_geo, zero)

        # Accumulate into the resident per-image output block (VPU-only).
        out_ref[0, 0] += red(c_inter)
        out_ref[0, 1] += red(c_true)
        out_ref[0, 2] += red(c_pred)
        out_ref[0, 3] += red(c_geo)

    return kernel


def detection_loss(y_true_cls, y_pred_cls, y_true_geo, y_pred_geo,
                   training_mask):
    N, Cc, H, W = y_true_cls.shape
    assert Cc == 1 and y_true_geo.shape[1] == 5
    HW = H * W
    total = N * Cc * HW  # divisor of the torch.mean

    # ---- zero-copy views of the native NCHW layout (reshape only) ----
    if HW % LANE == 0:
        r_img = HW // LANE
        ytc = y_true_cls.reshape(N, r_img, LANE)
        ypc = y_pred_cls.reshape(N, r_img, LANE)
        msk = training_mask.reshape(N, r_img, LANE)
        tg = y_true_geo.reshape(N, 5, r_img, LANE)
        pg = y_pred_geo.reshape(N, 5, r_img, LANE)
    else:
        # Rare odd-shape fallback: lane padding (zero pads are inert).
        r_img = pl.cdiv(HW, LANE)
        pad = r_img * LANE - HW

        def pad2(x):
            return jnp.pad(x.reshape(N, HW), ((0, 0), (0, pad))).reshape(
                N, r_img, LANE)

        def pad_geo(g):
            return jnp.pad(g.reshape(N, 5, HW),
                           ((0, 0), (0, 0), (0, pad))).reshape(
                N, 5, r_img, LANE)

        ytc, ypc, msk = pad2(y_true_cls), pad2(y_pred_cls), pad2(training_mask)
        tg, pg = pad_geo(y_true_geo), pad_geo(y_pred_geo)

    # ---- fixed tile size; tail handled in-kernel ----
    tr = min(MAX_TR, r_img)
    tiles = pl.cdiv(r_img, tr)
    has_tail = (r_img % tr) != 0
    acc_rows = 8 if tr % 8 == 0 else 1

    kernel = _make_kernel(tr, acc_rows, r_img, has_tail)

    partials = pl.pallas_call(
        kernel,
        out_shape=jax.ShapeDtypeStruct((N, 4, acc_rows, LANE), jnp.float32),
        grid_spec=pltpu.PrefetchScalarGridSpec(
            num_scalar_prefetch=0,
            grid=(N, tiles),
            in_specs=[
                pl.BlockSpec((1, tr, LANE), lambda n, i: (n, i, 0)),     # y_true_cls
                pl.BlockSpec((1, tr, LANE), lambda n, i: (n, i, 0)),     # y_pred_cls
                pl.BlockSpec((1, 5, tr, LANE), lambda n, i: (n, 0, i, 0)),  # y_true_geo
                pl.BlockSpec((1, 5, tr, LANE), lambda n, i: (n, 0, i, 0)),  # y_pred_geo
                pl.BlockSpec((1, tr, LANE), lambda n, i: (n, i, 0)),     # training_mask
            ],
            out_specs=pl.BlockSpec((1, 4, acc_rows, LANE),
                                   lambda n, i: (n, 0, 0, 0)),
        ),
        compiler_params=pltpu.CompilerParams(
            dimension_semantics=("parallel", "arbitrary")),
    )(ytc, ypc, tg, pg, msk)

    # Tiny epilogue: finish the reductions and combine (cheap XLA ops).
    sums = jnp.sum(partials.astype(jnp.float32), axis=(0, 2, 3))  # (4,)
    inter, true_s, pred_s, geo_s = sums[0], sums[1], sums[2], sums[3]
    eps = 1e-5
    dice_loss = 1.0 - 2.0 * inter / (true_s + pred_s + eps)
    return geo_s / float(total) + 0.01 * dice_loss


def _reference(y_true_cls, y_pred_cls, y_true_geo, y_pred_geo, training_mask):
    eps = 1e-5
    inter = jnp.sum(y_true_cls * y_pred_cls * training_mask)
    union = (jnp.sum(y_true_cls * training_mask)
             + jnp.sum(y_pred_cls * training_mask) + eps)
    cls_loss = (1.0 - 2.0 * inter / union) * 0.01

    d1g, d2g, d3g, d4g, thg = jnp.split(y_true_geo, 5, axis=1)
    d1p, d2p, d3p, d4p, thp = jnp.split(y_pred_geo, 5, axis=1)
    area_gt = (d1g + d3g) * (d2g + d4g)
    area_pred = (d1p + d3p) * (d2p + d4p)
    w_union = jnp.minimum(d2g, d2p) + jnp.minimum(d4g, d4p)
    h_union = jnp.minimum(d1g, d1p) + jnp.minimum(d3g, d3p)
    area_intersect = w_union * h_union
    area_union = area_gt + area_pred - area_intersect
    l_aabb = -jnp.log((area_intersect + 1.0) / (area_union + 1.0))
    l_theta = 1.0 - jnp.cos(thp - thg)
    l_g = l_aabb + 20.0 * l_theta
    return jnp.mean(l_g * y_true_cls * training_mask) + cls_loss


if __name__ == "__main__":
    key = jax.random.PRNGKey(0)
    N, H, W = 2, 16, 16
    k1, k2, k3, k4, k5 = jax.random.split(key, 5)
    y_true_cls = (jax.random.uniform(k1, (N, 1, H, W)) > 0.5).astype(jnp.float32)
    y_pred_cls = jax.nn.sigmoid(jax.random.normal(k2, (N, 1, H, W))).astype(jnp.float32)
    y_true_geo = jax.random.uniform(k3, (N, 5, H, W), minval=0.0, maxval=10.0)
    y_pred_geo = jax.random.uniform(k4, (N, 5, H, W), minval=0.0, maxval=10.0)
    training_mask = (jax.random.uniform(k5, (N, 1, H, W)) > 0.2).astype(jnp.float32)

    loss = detection_loss(y_true_cls, y_pred_cls, y_true_geo, y_pred_geo,
                          training_mask)
    loss = jax.block_until_ready(loss)

    ref = _reference(y_true_cls, y_pred_cls, y_true_geo, y_pred_geo,
                     training_mask)
    assert jnp.allclose(loss, ref, rtol=1e-4, atol=1e-5), (loss, ref)
    print("KERNEL_OK")
</pallas_src>

<mosaic_0001>
module attributes {stable_mosaic.version = 11 : i64} {
  func.func @kernel(%arg0: i32, %arg1: i32, %arg2: memref<1x2x128xf32, #tpu.memory_space<vmem>>, %arg3: memref<1x2x128xf32, #tpu.memory_space<vmem>>, %arg4: memref<1x5x2x128xf32, #tpu.memory_space<vmem>>, %arg5: memref<1x5x2x128xf32, #tpu.memory_space<vmem>>, %arg6: memref<1x2x128xf32, #tpu.memory_space<vmem>>, %arg7: memref<1x4x1x128xf32, #tpu.memory_space<vmem>>) attributes {dimension_semantics = [#tpu.dimension_semantics<parallel>, #tpu.dimension_semantics<arbitrary>], iteration_bounds = array<i64: 2, 1>, scalar_prefetch = 0 : i64, scratch_operands = 0 : i64, tpu.core_type = #tpu.core_type<tc>, window_params = [{transform_indices = @transform_0, window_bounds = array<i64: 1, 2, 128>}, {transform_indices = @transform_1, window_bounds = array<i64: 1, 2, 128>}, {transform_indices = @transform_2, window_bounds = array<i64: 1, 5, 2, 128>}, {transform_indices = @transform_3, window_bounds = array<i64: 1, 5, 2, 128>}, {transform_indices = @transform_4, window_bounds = array<i64: 1, 2, 128>}, {transform_indices = @transform_5, window_bounds = array<i64: 1, 4, 1, 128>}]} {
    %c0_i32 = arith.constant 0 : i32
    %0 = arith.cmpi eq, %arg1, %c0_i32 : i32
    %1 = arith.extui %0 : i1 to i32
    %c0_i32_0 = arith.constant 0 : i32
    %2 = arith.cmpi ne, %1, %c0_i32_0 : i32
    scf.if %2 {
      %cst_85 = arith.constant 0.000000e+00 : f32
      %95 = vector.broadcast %cst_85 : f32 to vector<1x4x1x128xf32>
      %c0_86 = arith.constant 0 : index
      %c0_87 = arith.constant 0 : index
      %c0_88 = arith.constant 0 : index
      %c0_89 = arith.constant 0 : index
      %96 = vector.load %arg7[%c0_86, %c0_87, %c0_88, %c0_89] : memref<1x4x1x128xf32, #tpu.memory_space<vmem>>, vector<1x4x1x128xf32>
      tpu.vector_store %arg7[%c0_86, %c0_87, %c0_88, %c0_89], %95 {strides = array<i32>} : memref<1x4x1x128xf32, #tpu.memory_space<vmem>>, vector<1x4x1x128xf32>,
    } else {
    }
    %c0 = arith.constant 0 : index
    %c0_1 = arith.constant 0 : index
    %c0_2 = arith.constant 0 : index
    %3 = vector.load %arg2[%c0, %c0_1, %c0_2] : memref<1x2x128xf32, #tpu.memory_space<vmem>>, vector<1x2x128xf32>
    %4 = vector.shape_cast %3 : vector<1x2x128xf32> to vector<2x128xf32>
    %c0_3 = arith.constant 0 : index
    %c0_4 = arith.constant 0 : index
    %c0_5 = arith.constant 0 : index
    %5 = vector.load %arg3[%c0_3, %c0_4, %c0_5] : memref<1x2x128xf32, #tpu.memory_space<vmem>>, vector<1x2x128xf32>
    %6 = vector.shape_cast %5 : vector<1x2x128xf32> to vector<2x128xf32>
    %c0_6 = arith.constant 0 : index
    %c0_7 = arith.constant 0 : index
    %c0_8 = arith.constant 0 : index
    %7 = vector.load %arg6[%c0_6, %c0_7, %c0_8] : memref<1x2x128xf32, #tpu.memory_space<vmem>>, vector<1x2x128xf32>
    %8 = vector.shape_cast %7 : vector<1x2x128xf32> to vector<2x128xf32>
    %9 = arith.mulf %4, %8 : vector<2x128xf32>
    %10 = arith.mulf %6, %8 : vector<2x128xf32>
    %11 = arith.mulf %9, %6 : vector<2x128xf32>
    %c0_9 = arith.constant 0 : index
    %c0_10 = arith.constant 0 : index
    %c0_11 = arith.constant 0 : index
    %c0_12 = arith.constant 0 : index
    %12 = vector.load %arg4[%c0_9, %c0_10, %c0_11, %c0_12] : memref<1x5x2x128xf32, #tpu.memory_space<vmem>>, vector<1x1x2x128xf32>
    %13 = vector.shape_cast %12 : vector<1x1x2x128xf32> to vector<2x128xf32>
    %c0_13 = arith.constant 0 : index
    %c1 = arith.constant 1 : index
    %c0_14 = arith.constant 0 : index
    %c0_15 = arith.constant 0 : index
    %14 = vector.load %arg4[%c0_13, %c1, %c0_14, %c0_15] : memref<1x5x2x128xf32, #tpu.memory_space<vmem>>, vector<1x1x2x128xf32>
    %15 = vector.shape_cast %14 : vector<1x1x2x128xf32> to vector<2x128xf32>
    %c0_16 = arith.constant 0 : index
    %c2 = arith.constant 2 : index
    %c0_17 = arith.constant 0 : index
    %c0_18 = arith.constant 0 : index
    %16 = vector.load %arg4[%c0_16, %c2, %c0_17, %c0_18] : memref<1x5x2x128xf32, #tpu.memory_space<vmem>>, vector<1x1x2x128xf32>
    %17 = vector.shape_cast %16 : vector<1x1x2x128xf32> to vector<2x128xf32>
    %c0_19 = arith.constant 0 : index
    %c3 = arith.constant 3 : index
    %c0_20 = arith.constant 0 : index
    %c0_21 = arith.constant 0 : index
    %18 = vector.load %arg4[%c0_19, %c3, %c0_20, %c0_21] : memref<1x5x2x128xf32, #tpu.memory_space<vmem>>, vector<1x1x2x128xf32>
    %19 = vector.shape_cast %18 : vector<1x1x2x128xf32> to vector<2x128xf32>
    %c0_22 = arith.constant 0 : index
    %c4 = arith.constant 4 : index
    %c0_23 = arith.constant 0 : index
    %c0_24 = arith.constant 0 : index
    %20 = vector.load %arg4[%c0_22, %c4, %c0_23, %c0_24] : memref<1x5x2x128xf32, #tpu.memory_space<vmem>>, vector<1x1x2x128xf32>
    %21 = vector.shape_cast %20 : vector<1x1x2x128xf32> to vector<2x128xf32>
    %c0_25 = arith.constant 0 : index
    %c0_26 = arith.constant 0 : index
    %c0_27 = arith.constant 0 : index
    %c0_28 = arith.constant 0 : index
    %22 = vector.load %arg5[%c0_25, %c0_26, %c0_27, %c0_28] : memref<1x5x2x128xf32, #tpu.memory_space<vmem>>, vector<1x1x2x128xf32>
    %23 = vector.shape_cast %22 : vector<1x1x2x128xf32> to vector<2x128xf32>
    %c0_29 = arith.constant 0 : index
    %c1_30 = arith.constant 1 : index
    %c0_31 = arith.constant 0 : index
    %c0_32 = arith.constant 0 : index
    %24 = vector.load %arg5[%c0_29, %c1_30, %c0_31, %c0_32] : memref<1x5x2x128xf32, #tpu.memory_space<vmem>>, vector<1x1x2x128xf32>
    %25 = vector.shape_cast %24 : vector<1x1x2x128xf32> to vector<2x128xf32>
    %c0_33 = arith.constant 0 : index
    %c2_34 = arith.constant 2 : index
    %c0_35 = arith.constant 0 : index
    %c0_36 = arith.constant 0 : index
    %26 = vector.load %arg5[%c0_33, %c2_34, %c0_35, %c0_36] : memref<1x5x2x128xf32, #tpu.memory_space<vmem>>, vector<1x1x2x128xf32>
    %27 = vector.shape_cast %26 : vector<1x1x2x128xf32> to vector<2x128xf32>
    %c0_37 = arith.constant 0 : index
    %c3_38 = arith.constant 3 : index
    %c0_39 = arith.constant 0 : index
    %c0_40 = arith.constant 0 : index
    %28 = vector.load %arg5[%c0_37, %c3_38, %c0_39, %c0_40] : memref<1x5x2x128xf32, #tpu.memory_space<vmem>>, vector<1x1x2x128xf32>
    %29 = vector.shape_cast %28 : vector<1x1x2x128xf32> to vector<2x128xf32>
    %c0_41 = arith.constant 0 : index
    %c4_42 = arith.constant 4 : index
    %c0_43 = arith.constant 0 : index
    %c0_44 = arith.constant 0 : index
    %30 = vector.load %arg5[%c0_41, %c4_42, %c0_43, %c0_44] : memref<1x5x2x128xf32, #tpu.memory_space<vmem>>, vector<1x1x2x128xf32>
    %31 = vector.shape_cast %30 : vector<1x1x2x128xf32> to vector<2x128xf32>
    %32 = arith.addf %13, %17 : vector<2x128xf32>
    %33 = arith.addf %15, %19 : vector<2x128xf32>
    %34 = arith.mulf %32, %33 : vector<2x128xf32>
    %35 = arith.addf %23, %27 : vector<2x128xf32>
    %36 = arith.addf %25, %29 : vector<2x128xf32>
    %37 = arith.mulf %35, %36 : vector<2x128xf32>
    %38 = arith.minimumf %15, %25 : vector<2x128xf32>
    %39 = arith.minimumf %19, %29 : vector<2x128xf32>
    %40 = arith.addf %38, %39 : vector<2x128xf32>
    %41 = arith.minimumf %13, %23 : vector<2x128xf32>
    %42 = arith.minimumf %17, %27 : vector<2x128xf32>
    %43 = arith.addf %41, %42 : vector<2x128xf32>
    %44 = arith.mulf %40, %43 : vector<2x128xf32>
    %45 = arith.addf %34, %37 : vector<2x128xf32>
    %46 = arith.subf %45, %44 : vector<2x128xf32>
    %cst = arith.constant 1.000000e+00 : f32
    %47 = vector.broadcast %cst : f32 to vector<2x128xf32>
    %48 = arith.addf %44, %47 : vector<2x128xf32>
    %cst_45 = arith.constant 1.000000e+00 : f32
    %49 = vector.broadcast %cst_45 : f32 to vector<2x128xf32>
    %50 = arith.addf %46, %49 : vector<2x128xf32>
    %51 = arith.divf %48, %50 : vector<2x128xf32>
    %52 = math.log %51 : vector<2x128xf32>
    %cst_46 = arith.constant 0.000000e+00 : f32
    %53 = vector.broadcast %cst_46 : f32 to vector<2x128xf32>
    %54 = arith.subf %53, %52 : vector<2x128xf32>
    %55 = arith.subf %31, %21 : vector<2x128xf32>
    %56 = math.cos %55 : vector<2x128xf32>
    %cst_47 = arith.constant 1.000000e+00 : f32
    %57 = vector.broadcast %cst_47 : f32 to vector<2x128xf32>
    %58 = arith.subf %57, %56 : vector<2x128xf32>
    %cst_48 = arith.constant 2.000000e+01 : f32
    %59 = vector.broadcast %cst_48 : f32 to vector<2x128xf32>
    %60 = arith.mulf %59, %58 : vector<2x128xf32>
    %61 = arith.addf %54, %60 : vector<2x128xf32>
    %62 = arith.mulf %61, %9 : vector<2x128xf32>
    %c0_49 = arith.constant 0 : index
    %c0_50 = arith.constant 0 : index
    %c0_51 = arith.constant 0 : index
    %c0_52 = arith.constant 0 : index
    %63 = vector.load %arg7[%c0_49, %c0_50, %c0_51, %c0_52] : memref<1x4x1x128xf32, #tpu.memory_space<vmem>>, vector<1x1x1x128xf32>
    %64 = vector.shape_cast %63 : vector<1x1x1x128xf32> to vector<1x128xf32>
    %cst_53 = arith.constant dense<0.000000e+00> : vector<128xf32>
    %65 = vector.multi_reduction <add>, %11, %cst_53 [0] : vector<2x128xf32> to vector<128xf32>
    %66 = vector.shape_cast %65 : vector<128xf32> to vector<1x128xf32>
    %67 = arith.addf %64, %66 : vector<1x128xf32>
    %c0_54 = arith.constant 0 : index
    %c0_55 = arith.constant 0 : index
    %c0_56 = arith.constant 0 : index
    %c0_57 = arith.constant 0 : index
    %68 = vector.load %arg7[%c0_54, %c0_55, %c0_56, %c0_57] : memref<1x4x1x128xf32, #tpu.memory_space<vmem>>, vector<1x1x1x128xf32>
    %69 = vector.shape_cast %68 : vector<1x1x1x128xf32> to vector<1x128xf32>
    %70 = vector.shape_cast %67 : vector<1x128xf32> to vector<1x1x1x128xf32>
    tpu.vector_store %arg7[%c0_54, %c0_55, %c0_56, %c0_57], %70 {strides = array<i32>} : memref<1x4x1x128xf32, #tpu.memory_space<vmem>>, vector<1x1x1x128xf32>,
    %c0_58 = arith.constant 0 : index
    %c1_59 = arith.constant 1 : index
    %c0_60 = arith.constant 0 : index
    %c0_61 = arith.constant 0 : index
    %71 = vector.load %arg7[%c0_58, %c1_59, %c0_60, %c0_61] : memref<1x4x1x128xf32, #tpu.memory_space<vmem>>, vector<1x1x1x128xf32>
    %72 = vector.shape_cast %71 : vector<1x1x1x128xf32> to vector<1x128xf32>
    %cst_62 = arith.constant dense<0.000000e+00> : vector<128xf32>
    %73 = vector.multi_reduction <add>, %9, %cst_62 [0] : vector<2x128xf32> to vector<128xf32>
    %74 = vector.shape_cast %73 : vector<128xf32> to vector<1x128xf32>
    %75 = arith.addf %72, %74 : vector<1x128xf32>
    %c0_63 = arith.constant 0 : index
    %c1_64 = arith.constant 1 : index
    %c0_65 = arith.constant 0 : index
    %c0_66 = arith.constant 0 : index
    %76 = vector.load %arg7[%c0_63, %c1_64, %c0_65, %c0_66] : memref<1x4x1x128xf32, #tpu.memory_space<vmem>>, vector<1x1x1x128xf32>
    %77 = vector.shape_cast %76 : vector<1x1x1x128xf32> to vector<1x128xf32>
    %78 = vector.shape_cast %75 : vector<1x128xf32> to vector<1x1x1x128xf32>
    tpu.vector_store %arg7[%c0_63, %c1_64, %c0_65, %c0_66], %78 {strides = array<i32>} : memref<1x4x1x128xf32, #tpu.memory_space<vmem>>, vector<1x1x1x128xf32>,
    %c0_67 = arith.constant 0 : index
    %c2_68 = arith.constant 2 : index
    %c0_69 = arith.constant 0 : index
    %c0_70 = arith.constant 0 : index
    %79 = vector.load %arg7[%c0_67, %c2_68, %c0_69, %c0_70] : memref<1x4x1x128xf32, #tpu.memory_space<vmem>>, vector<1x1x1x128xf32>
    %80 = vector.shape_cast %79 : vector<1x1x1x128xf32> to vector<1x128xf32>
    %cst_71 = arith.constant dense<0.000000e+00> : vector<128xf32>
    %81 = vector.multi_reduction <add>, %10, %cst_71 [0] : vector<2x128xf32> to vector<128xf32>
    %82 = vector.shape_cast %81 : vector<128xf32> to vector<1x128xf32>
    %83 = arith.addf %80, %82 : vector<1x128xf32>
    %c0_72 = arith.constant 0 : index
    %c2_73 = arith.constant 2 : index
    %c0_74 = arith.constant 0 : index
    %c0_75 = arith.constant 0 : index
    %84 = vector.load %arg7[%c0_72, %c2_73, %c0_74, %c0_75] : memref<1x4x1x128xf32, #tpu.memory_space<vmem>>, vector<1x1x1x128xf32>
    %85 = vector.shape_cast %84 : vector<1x1x1x128xf32> to vector<1x128xf32>
    %86 = vector.shape_cast %83 : vector<1x128xf32> to vector<1x1x1x128xf32>
    tpu.vector_store %arg7[%c0_72, %c2_73, %c0_74, %c0_75], %86 {strides = array<i32>} : memref<1x4x1x128xf32, #tpu.memory_space<vmem>>, vector<1x1x1x128xf32>,
    %c0_76 = arith.constant 0 : index
    %c3_77 = arith.constant 3 : index
    %c0_78 = arith.constant 0 : index
    %c0_79 = arith.constant 0 : index
    %87 = vector.load %arg7[%c0_76, %c3_77, %c0_78, %c0_79] : memref<1x4x1x128xf32, #tpu.memory_space<vmem>>, vector<1x1x1x128xf32>
    %88 = vector.shape_cast %87 : vector<1x1x1x128xf32> to vector<1x128xf32>
    %cst_80 = arith.constant dense<0.000000e+00> : vector<128xf32>
    %89 = vector.multi_reduction <add>, %62, %cst_80 [0] : vector<2x128xf32> to vector<128xf32>
    %90 = vector.shape_cast %89 : vector<128xf32> to vector<1x128xf32>
    %91 = arith.addf %88, %90 : vector<1x128xf32>
    %c0_81 = arith.constant 0 : index
    %c3_82 = arith.constant 3 : index
    %c0_83 = arith.constant 0 : index
    %c0_84 = arith.constant 0 : index
    %92 = vector.load %arg7[%c0_81, %c3_82, %c0_83, %c0_84] : memref<1x4x1x128xf32, #tpu.memory_space<vmem>>, vector<1x1x1x128xf32>
    %93 = vector.shape_cast %92 : vector<1x1x1x128xf32> to vector<1x128xf32>
    %94 = vector.shape_cast %91 : vector<1x128xf32> to vector<1x1x1x128xf32>
    tpu.vector_store %arg7[%c0_81, %c3_82, %c0_83, %c0_84], %94 {strides = array<i32>} : memref<1x4x1x128xf32, #tpu.memory_space<vmem>>, vector<1x1x1x128xf32>,
    return
  }
  func.func @transform_0(%arg0: i32, %arg1: i32) -> (i32, i32, i32) {
    %c0_i32 = arith.constant 0 : i32
    %c0_i32_0 = arith.constant 0 : i32
    return %arg0, %arg1, %c0_i32 : i32, i32, i32
  }
  func.func @transform_1(%arg0: i32, %arg1: i32) -> (i32, i32, i32) {
    %c0_i32 = arith.constant 0 : i32
    %c0_i32_0 = arith.constant 0 : i32
    return %arg0, %arg1, %c0_i32 : i32, i32, i32
  }
  func.func @transform_2(%arg0: i32, %arg1: i32) -> (i32, i32, i32, i32) {
    %c0_i32 = arith.constant 0 : i32
    %c0_i32_0 = arith.constant 0 : i32
    %c0_i32_1 = arith.constant 0 : i32
    return %arg0, %c0_i32, %arg1, %c0_i32_0 : i32, i32, i32, i32
  }
  func.func @transform_3(%arg0: i32, %arg1: i32) -> (i32, i32, i32, i32) {
    %c0_i32 = arith.constant 0 : i32
    %c0_i32_0 = arith.constant 0 : i32
    %c0_i32_1 = arith.constant 0 : i32
    return %arg0, %c0_i32, %arg1, %c0_i32_0 : i32, i32, i32, i32
  }
  func.func @transform_4(%arg0: i32, %arg1: i32) -> (i32, i32, i32) {
    %c0_i32 = arith.constant 0 : i32
    %c0_i32_0 = arith.constant 0 : i32
    return %arg0, %arg1, %c0_i32 : i32, i32, i32
  }
  func.func @transform_5(%arg0: i32, %arg1: i32) -> (i32, i32, i32, i32) {
    %c0_i32 = arith.constant 0 : i32
    %c0_i32_0 = arith.constant 0 : i32
    %c0_i32_1 = arith.constant 0 : i32
    %c0_i32_2 = arith.constant 0 : i32
    return %arg0, %c0_i32, %c0_i32_0, %c0_i32_1 : i32, i32, i32, i32
  }
}

</mosaic_0001>

<llo_original>
// kernel: tpu_custom_call.1
$region0: #{tpu_custom_call.1}
  #allocation0 [shape = 'u32[]', space=smem, size = 0x4, offset = 0x4, fixed_abs, tag = 'smem constant byte address 0x4 - core index']
  #allocation1 [shape = 'u32[144,128]{1,0:T(1,128)}', space=vmem, size = 0x12000, scoped, tag = 'internal scratch']
  %s0 = inlined_call_operand.hbm [shape: f32[2,2,128], index: 0, kind: input, shape index: {}]
  %s1 = inlined_call_operand.hbm [shape: f32[2,2,128], index: 1, kind: input, shape index: {}]
  %s2 = inlined_call_operand.hbm [shape: f32[2,5,2,128], index: 2, kind: input, shape index: {}]
  %s3 = inlined_call_operand.hbm [shape: f32[2,5,2,128], index: 3, kind: input, shape index: {}]
  %s4 = inlined_call_operand.vmem [shape: f32[2,2,128], index: 4, kind: input, shape index: {}]
  %s5 = inlined_call_operand.hbm [shape: f32[2,4,1,128], index: 5, kind: output, shape index: {}]
  %s6 = sld [smem:[#allocation0]]
  $region73: #{tpu_custom_call.1} parent=0
    _
  %s8 = ssub.s32 1, %s6
  %s9 = scalar_select 0, %s8, %s6
  $region1: #{tpu_custom_call.1} parent=0
    #allocation2 [shape = 'u8[2048]{0}', space=vmem, size = 0x800, scoped, tag = 'input window, operand 0']
    #allocation3 [shape = 's32[2]{0}', space=sflag, size = 0x8, scoped, tag = 'scoped memory for tpu_custom_call.1']
    #allocation4 [shape = 's32[2]{0}', space=sflag, size = 0x8, scoped, tag = 'scoped memory for tpu_custom_call.1']
    #allocation5 [shape = 'u8[2048]{0}', space=vmem, size = 0x800, scoped, tag = 'input window, operand 1']
    #allocation6 [shape = 's32[2]{0}', space=sflag, size = 0x8, scoped, tag = 'scoped memory for tpu_custom_call.1']
    #allocation7 [shape = 'u8[10240]{0}', space=vmem, size = 0x2800, scoped, tag = 'input window, operand 2']
    #allocation8 [shape = 'u8[10240]{0}', space=vmem, size = 0x2800, scoped, tag = 'input window, operand 3']
    #allocation9 [shape = 's32[2]{0}', space=sflag, size = 0x8, scoped, tag = 'scoped memory for tpu_custom_call.1']
    #allocation10 [shape = 'u8[4096]{0}', space=vmem, size = 0x1000, scoped, tag = 'output window, operand 0']
    %10 = vsyncpa [#allocation3], 0
    %s11 = scalar_lea.sflag [#allocation3], 1
    %12 = vsyncpa %s11, 0
    %13 = vsyncpa [#allocation6], 0
    %s14 = scalar_lea.sflag [#allocation6], 1
    %15 = vsyncpa %s14, 0
    %16 = vsyncpa [#allocation9], 0
    %s17 = scalar_lea.sflag [#allocation9], 1
    %18 = vsyncpa %s17, 0
    %19 = vsyncpa [#allocation4], 0
    %s20 = scalar_lea.sflag [#allocation4], 1
    %21 = vsyncpa %s20, 0
    loop: start=0, step=1, limit=4
    $region2: #{tpu_custom_call.1} parent=1 // loop_pre_header
      _
    $region3: #{tpu_custom_call.1} parent=1 // loop_header
      %s23 = sphi 0, %s27
      %p24 = scmp.ge.s32.totalorder %s23, 4
      %s30 = sphi 0, %s42
      %s31 = sphi 0, %s38
      %s32 = sphi 0, %s30
      %s33 = sphi 0, %s31
      %s34 = sphi 0, %s32
      %s35 = sphi 0, %s33
      %s47 = sphi 0, %s49
      %s50 = sphi 0, %s47
      %s51 = sphi 0, %s50
      %s67 = sphi 0, %s51
      %s75 = sphi 0, %s77
      %s78 = sphi 0, %s75
      %s79 = sphi 0, %s78
      %s95 = sphi 0, %s79
      %s103 = sphi 0, %s105
      %s106 = sphi 0, %s103
      %s107 = sphi 0, %s106
      %s123 = sphi 0, %s107
      %s131 = sphi 0, %s133
      %s134 = sphi 0, %s131
      %s135 = sphi 0, %s134
      %s151 = sphi 0, %s135
      %s159 = sphi 0, %s161
      %s162 = sphi 0, %s159
      %s163 = sphi 0, %s162
      %s179 = sphi 0, %s163
      %s185 = sphi 0, %s187
      %s188 = sphi 0, %s185
      %s189 = sphi 0, %s188
      %s205 = sphi 0, %s189
    $region4: #{tpu_custom_call.1} parent=1 // loop_header_branch
      %26 = sbr.rel (%p24) target = $region8
    $region5: #{tpu_custom_call.1} parent=1 // loop_body
      %s28 = ssub.s32 %s23, 1
      %s29 = ssub.s32 %s23, 2
      %s36 = sadd.s32 1, %s31
      %p37 = scmp.ge.s32.totalorder %s36, 1
      %s38 = scalar_select %p37, 0, %s36
      %s39 = sadd.s32 1, %s30
      %s40 = scalar_select %p37, %s39, %s30
      %p41 = scmp.ge.s32.totalorder %s40, 2
      %s42 = scalar_select %p41, 0, %s40
      %s43 = ssub.s32 %s30, %s42
      %s44 = ssub.s32 %s31, %s38
      %s45 = sor.u32 %s43, %s44
      %p46 = scmp.eq.s32.totalorder %s45, 0
      %s48 = sadd.s32 %s47, 1
      %s49 = scalar_select %p46, %s47, %s48
      %p52 = pneg %p46
      %p53 = scmp.eq.s32.totalorder %s23, 1
      %p54 = por %p52, %p53
      %p55 = scmp.ne.s32.totalorder %s47, %s50
      %p56 = scmp.eq.s32.totalorder %s23, 0
      %p57 = por %p55, %p56
      %p58 = scmp.ne.s32.totalorder %s47, %s50
      %p59 = scmp.eq.s32.totalorder %s28, 1
      %p60 = por %p58, %p59
      %p61 = scmp.ne.s32.totalorder %s50, %s51
      %p62 = scmp.eq.s32.totalorder %s28, 0
      %p63 = por %p61, %p62
      %p64 = scmp.ne.s32.totalorder %s50, %s51
      %p65 = scmp.eq.s32.totalorder %s29, 1
      %p66 = por %p64, %p65
      %p68 = scmp.ne.s32.totalorder %s51, %s67
      %p69 = scmp.eq.s32.totalorder %s29, 0
      %p70 = por %p68, %p69
      %s71 = ssub.s32 %s30, %s42
      %s72 = ssub.s32 %s31, %s38
      %s73 = sor.u32 %s71, %s72
      %p74 = scmp.eq.s32.totalorder %s73, 0
      %s76 = sadd.s32 %s75, 1
      %s77 = scalar_select %p74, %s75, %s76
      %p80 = pneg %p74
      %p81 = scmp.eq.s32.totalorder %s23, 1
      %p82 = por %p80, %p81
      %p83 = scmp.ne.s32.totalorder %s75, %s78
      %p84 = scmp.eq.s32.totalorder %s23, 0
      %p85 = por %p83, %p84
      %p86 = scmp.ne.s32.totalorder %s75, %s78
      %p87 = scmp.eq.s32.totalorder %s28, 1
      %p88 = por %p86, %p87
      %p89 = scmp.ne.s32.totalorder %s78, %s79
      %p90 = scmp.eq.s32.totalorder %s28, 0
      %p91 = por %p89, %p90
      %p92 = scmp.ne.s32.totalorder %s78, %s79
      %p93 = scmp.eq.s32.totalorder %s29, 1
      %p94 = por %p92, %p93
      %p96 = scmp.ne.s32.totalorder %s79, %s95
      %p97 = scmp.eq.s32.totalorder %s29, 0
      %p98 = por %p96, %p97
      %s99 = ssub.s32 %s30, %s42
      %s100 = ssub.s32 %s31, %s38
      %s101 = sor.u32 %s99, %s100
      %p102 = scmp.eq.s32.totalorder %s101, 0
      %s104 = sadd.s32 %s103, 1
      %s105 = scalar_select %p102, %s103, %s104
      %p108 = pneg %p102
      %p109 = scmp.eq.s32.totalorder %s23, 1
      %p110 = por %p108, %p109
      %p111 = scmp.ne.s32.totalorder %s103, %s106
      %p112 = scmp.eq.s32.totalorder %s23, 0
      %p113 = por %p111, %p112
      %p114 = scmp.ne.s32.totalorder %s103, %s106
      %p115 = scmp.eq.s32.totalorder %s28, 1
      %p116 = por %p114, %p115
      %p117 = scmp.ne.s32.totalorder %s106, %s107
      %p118 = scmp.eq.s32.totalorder %s28, 0
      %p119 = por %p117, %p118
      %p120 = scmp.ne.s32.totalorder %s106, %s107
      %p121 = scmp.eq.s32.totalorder %s29, 1
      %p122 = por %p120, %p121
      %p124 = scmp.ne.s32.totalorder %s107, %s123
      %p125 = scmp.eq.s32.totalorder %s29, 0
      %p126 = por %p124, %p125
      %s127 = ssub.s32 %s30, %s42
      %s128 = ssub.s32 %s31, %s38
      %s129 = sor.u32 %s127, %s128
      %p130 = scmp.eq.s32.totalorder %s129, 0
      %s132 = sadd.s32 %s131, 1
      %s133 = scalar_select %p130, %s131, %s132
      %p136 = pneg %p130
      %p137 = scmp.eq.s32.totalorder %s23, 1
      %p138 = por %p136, %p137
      %p139 = scmp.ne.s32.totalorder %s131, %s134
      %p140 = scmp.eq.s32.totalorder %s23, 0
      %p141 = por %p139, %p140
      %p142 = scmp.ne.s32.totalorder %s131, %s134
      %p143 = scmp.eq.s32.totalorder %s28, 1
      %p144 = por %p142, %p143
      %p145 = scmp.ne.s32.totalorder %s134, %s135
      %p146 = scmp.eq.s32.totalorder %s28, 0
      %p147 = por %p145, %p146
      %p148 = scmp.ne.s32.totalorder %s134, %s135
      %p149 = scmp.eq.s32.totalorder %s29, 1
      %p150 = por %p148, %p149
      %p152 = scmp.ne.s32.totalorder %s135, %s151
      %p153 = scmp.eq.s32.totalorder %s29, 0
      %p154 = por %p152, %p153
      %s155 = ssub.s32 %s30, %s42
      %s156 = ssub.s32 %s31, %s38
      %s157 = sor.u32 %s155, %s156
      %p158 = scmp.eq.s32.totalorder %s157, 0
      %s160 = sadd.s32 %s159, 1
      %s161 = scalar_select %p158, %s159, %s160
      %p164 = pneg %p158
      %p165 = scmp.eq.s32.totalorder %s23, 1
      %p166 = por %p164, %p165
      %p167 = scmp.ne.s32.totalorder %s159, %s162
      %p168 = scmp.eq.s32.totalorder %s23, 0
      %p169 = por %p167, %p168
      %p170 = scmp.ne.s32.totalorder %s159, %s162
      %p171 = scmp.eq.s32.totalorder %s28, 1
      %p172 = por %p170, %p171
      %p173 = scmp.ne.s32.totalorder %s162, %s163
      %p174 = scmp.eq.s32.totalorder %s28, 0
      %p175 = por %p173, %p174
      %p176 = scmp.ne.s32.totalorder %s162, %s163
      %p177 = scmp.eq.s32.totalorder %s29, 1
      %p178 = por %p176, %p177
      %p180 = scmp.ne.s32.totalorder %s163, %s179
      %p181 = scmp.eq.s32.totalorder %s29, 0
      %p182 = por %p180, %p181
      %s183 = ssub.s32 %s30, %s42
      %p184 = scmp.eq.s32.totalorder %s183, 0
      %s186 = sadd.s32 %s185, 1
      %s187 = scalar_select %p184, %s185, %s186
      %p190 = pneg %p184
      %p191 = scmp.eq.s32.totalorder %s23, 1
      %p192 = por %p190, %p191
      %p193 = scmp.ne.s32.totalorder %s185, %s188
      %p194 = scmp.eq.s32.totalorder %s23, 0
      %p195 = por %p193, %p194
      %p196 = scmp.ne.s32.totalorder %s185, %s188
      %p197 = scmp.eq.s32.totalorder %s28, 1
      %p198 = por %p196, %p197
      %p199 = scmp.ne.s32.totalorder %s188, %s189
      %p200 = scmp.eq.s32.totalorder %s28, 0
      %p201 = por %p199, %p200
      %p202 = scmp.ne.s32.totalorder %s188, %s189
      %p203 = scmp.eq.s32.totalorder %s29, 1
      %p204 = por %p202, %p203
      %p206 = scmp.ne.s32.totalorder %s189, %s205
      %p207 = scmp.eq.s32.totalorder %s29, 0
      %p208 = por %p206, %p207
      %p209 = scmp.le.s32.totalorder 1, %s23
      %p210 = scmp.lt.s32.totalorder %s23, 3
      %p211 = pnand %p209, %p210
      %p212 = pneg %p211
      // Predicated region
      $region9: #{tpu_custom_call.1} parent=5 // pred_check
        _
      $region10: #{tpu_custom_call.1} parent=5 // pred_check_branch
        %214 = sbr.rel (%p211) target = $region12
      $region11: #{tpu_custom_call.1} parent=5 // pred_region
        %s215 = ssub.s32 %s23, 1
      $region12: #{tpu_custom_call.1} parent=5 // pred_fallthru
        _
      %p216 = scmp.lt.s32.totalorder %s23, 2
      // Predicated region
      $region13: #{tpu_custom_call.1} parent=5 // pred_check
        %p217 = pneg %p216
      $region14: #{tpu_custom_call.1} parent=5 // pred_check_branch
        %219 = sbr.rel (%p217) target = $region16
      $region15: #{tpu_custom_call.1} parent=5 // pred_region
        // Predicated region
        $region17: #{tpu_custom_call.1} parent=15 // pred_check
          %p220 = pneg %p57
        $region18: #{tpu_custom_call.1} parent=15 // pred_check_branch
          %222 = sbr.rel (%p220) target = $region20
        $region19: #{tpu_custom_call.1} parent=15 // pred_region
          %s223 = sand.u32 %s47, 1
          %s224 = scalar_lea.sflag [#allocation3], %s223
          %s225 = sand.u32 %s47, 1
          %s226 = smul.addr %s225, 2
          %s227 = scalar_lea.vmem [#allocation2], %s226
          %s229 = ssub.s32 32, 32
          %230 = vsyncadd %s224, %s229
          %s231 = sadd.s32 %s31, %s30
          %s232 = smul.addr %s231, 32
          %s233 = scalar_lea.hbm %s0, %s232
          %s235 = sshll.u32 %s227, 4
          %s236 = int_to_ptr.vmem [resolvable:$true] %s235
          %238 = dma.hbm_to_vmem [thread:$0]  %s233, 32, %s236, %s224
        $region20: #{tpu_custom_call.1} parent=15 // pred_fallthru
          _
        // Predicated region
        $region21: #{tpu_custom_call.1} parent=15 // pred_check
          %p239 = pneg %p85
        $region22: #{tpu_custom_call.1} parent=15 // pred_check_branch
          %241 = sbr.rel (%p239) target = $region24
        $region23: #{tpu_custom_call.1} parent=15 // pred_region
          %s242 = sand.u32 %s23, 1
          %s243 = scalar_lea.sflag [#allocation6], %s242
          %s244 = sand.u32 %s75, 1
          %s245 = smul.addr %s244, 2
          %s246 = scalar_lea.vmem [#allocation5], %s245
          %s248 = ssub.s32 32, 32
          %249 = vsyncadd %s243, %s248
          %s250 = sadd.s32 %s31, %s30
          %s251 = smul.addr %s250, 32
          %s252 = scalar_lea.hbm %s1, %s251
          %s254 = sshll.u32 %s246, 4
          %s255 = int_to_ptr.vmem [resolvable:$true] %s254
          %257 = dma.hbm_to_vmem [thread:$0]  %s252, 32, %s255, %s243
        $region24: #{tpu_custom_call.1} parent=15 // pred_fallthru
          _
        // Predicated region
        $region25: #{tpu_custom_call.1} parent=15 // pred_check
          %p258 = pneg %p113
        $region26: #{tpu_custom_call.1} parent=15 // pred_check_branch
          %260 = sbr.rel (%p258) target = $region28
        $region27: #{tpu_custom_call.1} parent=15 // pred_region
          %s261 = sand.u32 %s23, 1
          %s262 = scalar_lea.sflag [#allocation6], %s261
          %s263 = sand.u32 %s103, 1
          %s264 = smul.addr %s263, 10
          %s265 = scalar_lea.vmem [#allocation7], %s264
          %s267 = ssub.s32 160, 160
          %268 = vsyncadd %s262, %s267
          %s269 = smul.addr %s30, 5
          %s270 = sadd.s32 %s31, %s269
          %s271 = smul.addr %s270, 32
          %s272 = scalar_lea.hbm %s2, %s271
          %s273 = sshll.u32 %s265, 4
          %s274 = int_to_ptr.vmem [resolvable:$true] %s273
          %279 = dma.hbm_to_vmem [thread:$0]  %s272, 160, %s274, %s262, 32, 32, 2
        $region28: #{tpu_custom_call.1} parent=15 // pred_fallthru
          _
        // Predicated region
        $region29: #{tpu_custom_call.1} parent=15 // pred_check
          %p280 = pneg %p141
        $region30: #{tpu_custom_call.1} parent=15 // pred_check_branch
          %282 = sbr.rel (%p280) target = $region32
        $region31: #{tpu_custom_call.1} parent=15 // pred_region
          %s283 = sand.u32 %s131, 1
          %s284 = scalar_lea.sflag [#allocation9], %s283
          %s285 = sand.u32 %s131, 1
          %s286 = smul.addr %s285, 10
          %s287 = scalar_lea.vmem [#allocation8], %s286
          %s289 = ssub.s32 160, 160
          %290 = vsyncadd %s284, %s289
          %s291 = smul.addr %s30, 5
          %s292 = sadd.s32 %s31, %s291
          %s293 = smul.addr %s292, 32
          %s294 = scalar_lea.hbm %s3, %s293
          %s295 = sshll.u32 %s287, 4
          %s296 = int_to_ptr.vmem [resolvable:$true] %s295
          %301 = dma.hbm_to_vmem [thread:$0]  %s294, 160, %s296, %s284, 32, 32, 2
        $region32: #{tpu_custom_call.1} parent=15 // pred_fallthru
          _
        // Predicated region
        $region33: #{tpu_custom_call.1} parent=15 // pred_check
          %p302 = pneg %p169
        $region34: #{tpu_custom_call.1} parent=15 // pred_check_branch
          %304 = sbr.rel (%p302) target = $region36
        $region35: #{tpu_custom_call.1} parent=15 // pred_region
          %p305 = scmp.lt.s32.totalorder %s30, 1
          %s306 = scalar_select %p305, %s30, 1
          %p307 = scmp.lt.s32.totalorder %s31, 0
          %s308 = scalar_select %p307, %s31, 0
          %s309 = sadd.s32 %s308, %s306
          %s310 = smul.addr %s309, 2
          %s311 = scalar_lea.vmem %s4, %s310
        $region36: #{tpu_custom_call.1} parent=15 // pred_fallthru
          _
      $region16: #{tpu_custom_call.1} parent=5 // pred_fallthru
        _
      %p312 = scmp.le.s32.totalorder 1, %s23
      %p313 = scmp.lt.s32.totalorder %s23, 3
      %p314 = pnand %p312, %p313
      %p315 = pneg %p314
      // Predicated region
      $region37: #{tpu_custom_call.1} parent=5 // pred_check
        _
      $region38: #{tpu_custom_call.1} parent=5 // pred_check_branch
        %317 = sbr.rel (%p314) target = $region40
      $region39: #{tpu_custom_call.1} parent=5 // pred_region
        %s318 = ssub.s32 %s23, 1
        %s319 = sand.u32 %s50, 1
        %s320 = scalar_lea.sflag [#allocation3], %s319
        %s321 = sand.u32 %s50, 1
        %s322 = smul.addr %s321, 2
        %s323 = scalar_lea.vmem [#allocation2], %s322
        // Predicated region
        $region41: #{tpu_custom_call.1} parent=39 // pred_check
          %p324 = pneg %p63
        $region42: #{tpu_custom_call.1} parent=39 // pred_check_branch
          %326 = sbr.rel (%p324) target = $region44
        $region43: #{tpu_custom_call.1} parent=39 // pred_region
          %327 = dma.done %s320, 32
        $region44: #{tpu_custom_call.1} parent=39 // pred_fallthru
          _
        %s328 = sand.u32 %s28, 1
        %s329 = scalar_lea.sflag [#allocation6], %s328
        %s330 = sand.u32 %s78, 1
        %s331 = smul.addr %s330, 2
        %s332 = scalar_lea.vmem [#allocation5], %s331
        // Predicated region
        $region45: #{tpu_custom_call.1} parent=39 // pred_check
          %p333 = pneg %p91
        $region46: #{tpu_custom_call.1} parent=39 // pred_check_branch
          %335 = sbr.rel (%p333) target = $region48
        $region47: #{tpu_custom_call.1} parent=39 // pred_region
          %336 = dma.done %s329, 32
        $region48: #{tpu_custom_call.1} parent=39 // pred_fallthru
          _
        %s337 = sand.u32 %s28, 1
        %s338 = scalar_lea.sflag [#allocation6], %s337
        %s339 = sand.u32 %s106, 1
        %s340 = smul.addr %s339, 10
        %s341 = scalar_lea.vmem [#allocation7], %s340
        // Predicated region
        $region49: #{tpu_custom_call.1} parent=39 // pred_check
          %p342 = pneg %p119
        $region50: #{tpu_custom_call.1} parent=39 // pred_check_branch
          %344 = sbr.rel (%p342) target = $region52
        $region51: #{tpu_custom_call.1} parent=39 // pred_region
          %345 = dma.done %s338, 160
        $region52: #{tpu_custom_call.1} parent=39 // pred_fallthru
          _
        %s346 = sand.u32 %s134, 1
        %s347 = scalar_lea.sflag [#allocation9], %s346
        %s348 = sand.u32 %s134, 1
        %s349 = smul.addr %s348, 10
        %s350 = scalar_lea.vmem [#allocation8], %s349
        // Predicated region
        $region53: #{tpu_custom_call.1} parent=39 // pred_check
          %p351 = pneg %p147
        $region54: #{tpu_custom_call.1} parent=39 // pred_check_branch
          %353 = sbr.rel (%p351) target = $region56
        $region55: #{tpu_custom_call.1} parent=39 // pred_region
          %354 = dma.done %s347, 160
        $region56: #{tpu_custom_call.1} parent=39 // pred_fallthru
          _
        %s355 = sand.u32 %s50, 1
        %s356 = scalar_lea.sflag [#allocation3], %s355
        %s357 = sand.u32 %s50, 1
        %s358 = smul.addr %s357, 2
        %s359 = scalar_lea.vmem [#allocation2], %s358
        %p360 = pneg %p63
        %p361 = pneg %p60
        %s362 = sand.u32 %s28, 1
        %s363 = scalar_lea.sflag [#allocation6], %s362
        %s364 = sand.u32 %s78, 1
        %s365 = smul.addr %s364, 2
        %s366 = scalar_lea.vmem [#allocation5], %s365
        %p367 = pneg %p91
        %p368 = pneg %p88
        %s369 = sand.u32 %s28, 1
        %s370 = scalar_lea.sflag [#allocation6], %s369
        %s371 = sand.u32 %s106, 1
        %s372 = smul.addr %s371, 10
        %s373 = scalar_lea.vmem [#allocation7], %s372
        %p374 = pneg %p119
        %p375 = pneg %p116
        %s376 = sand.u32 %s134, 1
        %s377 = scalar_lea.sflag [#allocation9], %s376
        %s378 = sand.u32 %s134, 1
        %s379 = smul.addr %s378, 10
        %s380 = scalar_lea.vmem [#allocation8], %s379
        %p381 = pneg %p147
        %p382 = pneg %p144
        %p383 = scmp.lt.s32.totalorder %s32, 1
        %s384 = scalar_select %p383, %s32, 1
        %p385 = scmp.lt.s32.totalorder %s33, 0
        %s386 = scalar_select %p385, %s33, 0
        %s387 = sadd.s32 %s386, %s384
        %s388 = smul.addr %s387, 2
        %s389 = scalar_lea.vmem %s4, %s388
        %p390 = pneg %p175
        %p391 = pneg %p172
        %p392 = pneg %p201
        %p393 = pneg %p198
        %s394 = sand.u32 %s188, 1
        %s395 = scalar_lea.sflag [#allocation4], %s394
        %s396 = sand.u32 %s188, 1
        %s397 = smul.addr %s396, 4
        %s398 = scalar_lea.vmem [#allocation10], %s397
        %p399 = scmp.lt.s32.totalorder %s32, 1
        %s400 = scalar_select %p399, %s32, 1
        %p401 = scmp.lt.s32.totalorder %s33, 0
        %s402 = scalar_select %p401, %s33, 0
        %s403 = sadd.s32 %s402, %s400
        %s404 = smul.addr %s403, 2
        %s405 = scalar_lea.vmem %s4, %s404
        %p406 = scmp.eq.s32.totalorder %s33, 0
        // Predicated region
        $region57: #{tpu_custom_call.1} parent=39 // pred_check
          %p407 = pneg %p406
        $region58: #{tpu_custom_call.1} parent=39 // pred_check_branch
          %409 = sbr.rel (%p407) target = $region60
        $region59: #{tpu_custom_call.1} parent=39 // pred_region
          %410 = vst [vmem:[%s398] sm:$0x1] 0.0
          %411 = vst [vmem:[%s398 + $0x1] sm:$0x1] 0.0
          %412 = vst [vmem:[%s398 + $0x2] sm:$0x1] 0.0
          %413 = vst [vmem:[%s398 + $0x3] sm:$0x1] 0.0
        $region60: #{tpu_custom_call.1} parent=39 // pred_fallthru
          _
        %v414 = vld [vmem:[%s323] sm:$0x3]
        %v415 = vld [vmem:[%s332] sm:$0x3]
        %v416 = vld [vmem:[%s405] sm:$0x3]
        %v417 = vmul.f32 %v414, %v416
        %v418 = vmul.f32 %v415, %v416
        %v419 = vmul.f32 %v417, %v415
        %v420 = vld [vmem:[%s341] sm:$0x3]
        %s421 = scalar_lea.vmem %s341, 2 [#allocation7]
        %v422 = vld [vmem:[%s421] sm:$0x3]
        %s423 = scalar_lea.vmem %s341, 4 [#allocation7]
        %v424 = vld [vmem:[%s423] sm:$0x3]
        %s425 = scalar_lea.vmem %s341, 6 [#allocation7]
        %v426 = vld [vmem:[%s425] sm:$0x3]
        %s427 = scalar_lea.vmem %s341, 8 [#allocation7]
        %v428 = vld [vmem:[%s427] sm:$0x3]
        %v429 = vld [vmem:[%s350] sm:$0x3]
        %s430 = scalar_lea.vmem %s350, 2 [#allocation8]
        %v431 = vld [vmem:[%s430] sm:$0x3]
        %s432 = scalar_lea.vmem %s350, 4 [#allocation8]
        %v433 = vld [vmem:[%s432] sm:$0x3]
        %s434 = scalar_lea.vmem %s350, 6 [#allocation8]
        %v435 = vld [vmem:[%s434] sm:$0x3]
        %s436 = scalar_lea.vmem %s350, 8 [#allocation8]
        %v437 = vld [vmem:[%s436] sm:$0x3]
        %v438 = vadd.f32 %v420, %v424
        %v439 = vadd.f32 %v422, %v426
        %v440 = vmul.f32 %v438, %v439
        %v441 = vadd.f32 %v429, %v433
        %v442 = vadd.f32 %v431, %v435
        %v443 = vmul.f32 %v441, %v442
        %v444 = vmin.f32 %v422, %v431
        %v445 = vmin.f32 %v426, %v435
        %v446 = vadd.f32 %v444, %v445
        %v447 = vmin.f32 %v420, %v429
        %v448 = vmin.f32 %v424, %v433
        %v449 = vadd.f32 %v447, %v448
        %v450 = vmul.f32 %v446, %v449
        %v451 = vadd.f32 %v440, %v443
        %v452 = vsub.f32 %v451, %v450
        %v453 = vadd.f32 %v450, 1.0
        %v454 = vadd.f32 %v452, 1.0
        %v455 = vrcp.pop %v454
        %v456 = vmul.f32 %v453, %v455
        %v457 = vlog2.pop %v456
        %v458 = vmul.f32 %v457, 0.6931472
        %v459 = vsub.f32 0.0, %v458
        %v460 = vsub.f32 %v437, %v428
        %v461 = vand.u32 2147483647, %v460
        %vm462 = vcmp.le.f32.partialorder %v461, 0.7853982
        %vm463 = vcmp.lt.s32.totalorder %v460, 0
        %v464 = vand.u32 %v460, 2139095040
        %v465 = vshrl.u32 %v464, 23
        %v466 = vsub.s32 %v465, 127
        %v467 = vand.u32 2147483647, %v460
        %v468 = vand.u32 %v467, 8388607
        %v469 = vor.u32 %v468, 8388608
        %v470 = vsub.s32 0, %v469
        %v471 = vadd.s32 %v466, 1
        %vm472 = vcmp.gt.s32.totalorder %v471, 0
        %v473 = vsel %vm472, %v471, 0
        %v474 = vshrl.u32 %v473, 5
        %v475 = vand.u32 %v473, 31
        %v476 = vsub.s32 32, %v475
        %v477 = vshrl.u32 683565275, %v476
        %v478 = vshll.u32 683565275, %v475
        %v479 = vshrl.u32 2475754826, %v476
        %v480 = vor.u32 %v478, %v479
        %v481 = vshll.u32 2475754826, %v475
        %v482 = vshrl.u32 2131351028, %v476
        %v483 = vor.u32 %v481, %v482
        %v484 = vshll.u32 2131351028, %v475
        %v485 = vshrl.u32 2102212464, %v476
        %v486 = vor.u32 %v484, %v485
        %v487 = vshll.u32 2102212464, %v475
        %v488 = vshrl.u32 920167782, %v476
        %v489 = vor.u32 %v487, %v488
        %v490 = vshll.u32 920167782, %v475
        %v491 = vshrl.u32 1326507024, %v476
        %v492 = vor.u32 %v490, %v491
        %vm493 = vcmp.lt.s32.totalorder %v474, 1
        %vm494 = vcmp.lt.s32.totalorder %v474, 2
        %vm495 = vcmp.lt.s32.totalorder %v474, 3
        %vm496 = vcmp.lt.s32.totalorder %v474, 4
        %v497 = vsel %vm493, %v477, %v480
        %v498 = vsel %vm496, %v486, 2102212464
        %v499 = vsel %vm495, %v483, %v498
        %v500 = vsel %vm494, %v497, %v499
        %v501 = vsel %vm493, %v480, %v483
        %v502 = vsel %vm496, %v489, 920167782
        %v503 = vsel %vm495, %v486, %v502
        %v504 = vsel %vm494, %v501, %v503
        %v505 = vsel %vm493, %v483, %v486
        %v506 = vsel %vm496, %v492, 1326507024
        %v507 = vsel %vm495, %v489, %v506
        %v508 = vsel %vm494, %v505, %v507
        %v509 = vshll.u32 %v469, 8
        %v510 = vmul.u32.u64.compose %v509, %v508
        %v511 = vextract.low.u32 %v510
        %v512 = vextract.high.u32 %v510
        %v513 = vmul.u32.u64.compose %v509, %v504
        %v514 = vextract.low.u32 %v513
        %v515 = vextract.high.u32 %v513
        %v516 = vmul.u32 %v509, %v500
        %v517 = vadd.s32 %v512, %v514
        %vm518 = vc.u32 %v512, %v514
        %v519 = vadd.s32 %v515, 1
        %v520 = vsel %vm518, %v519, %v515
        %v521 = vadd.s32 %v516, %v520
        %v522 = vadd.s32 %v521, 536870912
        %v523 = vshrl.u32 %v522, 30
        %v524 = vshll.u32 %v523, 30
        %v525 = vsub.s32 %v521, %v524
        %vm526 = vcmp.lt.s32.totalorder %v525, 0
        %v527 = vsub.s32 0, %v525
        %v528 = vsel %vm526, %v527, %v525
        %v529 = vclz %v528
        %v530 = vsub.s32 %v529, 2
        %vm531 = vcmp.gt.s32.totalorder 0, %v530
        %v532 = vsel %vm531, 0, %v530
        %v533 = vsub.s32 32, %v532
        %v534 = vshll.u32 %v525, %v532
        %v535 = vshrl.u32 %v517, %v533
        %v536 = vor.u32 %v534, %v535
        %v537 = vsub.s32 4294967266, %v532
        %v538 = vadd.s32 %v537, 127
        %v539 = vshll.u32 %v538, 23
        %v540 = vor.u32 4788187, %v539
        %v541 = vand.u32 2147483647, %v540
        %v543 = vcvt.s32.f32 %v536
        %v544 = vmul.f32 %v543, %v541
        %v545 = vxor.u32 %v544, 2147483648
        %v546 = vsel %vm463, %v545, %v544
        %v547 = vsub.s32 4, %v523
        %v548 = vsel %vm463, %v547, %v523
        %v549 = vsel %vm462, %v460, %v546
        %v550 = vsel %vm462, 0, %v548
        %v551 = vcosq.f32.pop %v549
        %v552 = vsinq.f32.pop %v549
        %vm553 = vweird.f32 %v460
        %v554 = vand.u32 %v550, 3
        %vm555 = vcmp.lt.s32.totalorder %v554, 2
        %vm556 = vcmp.eq.s32.totalorder %v554, 0
        %v557 = vxor.u32 %v552, 2147483648
        %v558 = vsel %vm556, %v551, %v557
        %vm559 = vcmp.eq.s32.totalorder %v554, 2
        %v560 = vxor.u32 %v551, 2147483648
        %v561 = vsel %vm559, %v560, %v552
        %v562 = vsel %vm555, %v558, %v561
        %v563 = vsel %vm553, nan, %v562
        %v564 = vsub.f32 1.0, %v563
        %v565 = vmul.f32 %v564, 20.0
        %v566 = vadd.f32 %v459, %v565
        %v567 = vmul.f32 %v566, %v417
        %v568 = vld [vmem:[%s398] sm:$0x1]
        %vm569 = vcmask 1041408
        %v570 = vsel %vm569, %v419, 0.0
        %v571 = vrot.slane %v570, 4
        %v572 = vadd.f32 %v570, %v571
        %v573 = vrot.slane %v572, 2
        %v574 = vadd.f32 %v572, %v573
        %v575 = vrot.slane %v574, 1
        %v576 = vadd.f32 %v574, %v575
        %v577 = vadd.f32 %v568, %v576
        %578 = vst [vmem:[%s398] sm:$0x1] %v577
        %s579 = scalar_lea.vmem %s398, 1 [#allocation10]
        %v580 = vld [vmem:[%s579] sm:$0x1]
        %v581 = vsel %vm569, %v417, 0.0
        %v582 = vrot.slane %v581, 4
        %v583 = vadd.f32 %v581, %v582
        %v584 = vrot.slane %v583, 2
        %v585 = vadd.f32 %v583, %v584
        %v586 = vrot.slane %v585, 1
        %v587 = vadd.f32 %v585, %v586
        %v588 = vadd.f32 %v580, %v587
        %589 = vst [vmem:[%s579] sm:$0x1] %v588
        %s590 = scalar_lea.vmem %s398, 2 [#allocation10]
        %v591 = vld [vmem:[%s590] sm:$0x1]
        %v592 = vsel %vm569, %v418, 0.0
        %v593 = vrot.slane %v592, 4
        %v594 = vadd.f32 %v592, %v593
        %v595 = vrot.slane %v594, 2
        %v596 = vadd.f32 %v594, %v595
        %v597 = vrot.slane %v596, 1
        %v598 = vadd.f32 %v596, %v597
        %v599 = vadd.f32 %v591, %v598
        %600 = vst [vmem:[%s590] sm:$0x1] %v599
        %s601 = scalar_lea.vmem %s398, 3 [#allocation10]
        %v602 = vld [vmem:[%s601] sm:$0x1]
        %v603 = vsel %vm569, %v567, 0.0
        %v604 = vrot.slane %v603, 4
        %v605 = vadd.f32 %v603, %v604
        %v606 = vrot.slane %v605, 2
        %v607 = vadd.f32 %v605, %v606
        %v608 = vrot.slane %v607, 1
        %v609 = vadd.f32 %v607, %v608
        %v610 = vadd.f32 %v602, %v609
        %611 = vst [vmem:[%s601] sm:$0x1] %v610
        %s612 = sand.u32 %s188, 1
        %s613 = scalar_lea.sflag [#allocation4], %s612
        %s614 = sand.u32 %s188, 1
        %s615 = smul.addr %s614, 4
        %s616 = scalar_lea.vmem [#allocation10], %s615
        // Predicated region
        $region61: #{tpu_custom_call.1} parent=39 // pred_check
          %p617 = pneg %p198
        $region62: #{tpu_custom_call.1} parent=39 // pred_check_branch
          %619 = sbr.rel (%p617) target = $region64
        $region63: #{tpu_custom_call.1} parent=39 // pred_region
          %s621 = ssub.s32 64, 64
          %622 = vsyncadd %s613, %s621
          %s623 = smul.addr %s32, 4
          %s624 = smul.addr %s623, 16
          %s625 = scalar_lea.hbm %s5, %s624
          %s626 = sshll.u32 %s616, 4
          %s627 = int_to_ptr.vmem [resolvable:$true] %s626
          %632 = dma.vmem_to_hbm [thread:$0]  %s627, 64, %s625, %s613, 16, 16, 1
        $region64: #{tpu_custom_call.1} parent=39 // pred_fallthru
          _
      $region40: #{tpu_custom_call.1} parent=5 // pred_fallthru
        _
      %p633 = scmp.le.s32.totalorder 2, %s23
      // Predicated region
      $region65: #{tpu_custom_call.1} parent=5 // pred_check
        %p634 = pneg %p633
      $region66: #{tpu_custom_call.1} parent=5 // pred_check_branch
        %636 = sbr.rel (%p634) target = $region68
      $region67: #{tpu_custom_call.1} parent=5 // pred_region
        %s637 = ssub.s32 %s23, 2
        // Predicated region
        $region69: #{tpu_custom_call.1} parent=67 // pred_check
          %p638 = pneg %p204
        $region70: #{tpu_custom_call.1} parent=67 // pred_check_branch
          %640 = sbr.rel (%p638) target = $region72
        $region71: #{tpu_custom_call.1} parent=67 // pred_region
          %s641 = sand.u32 %s189, 1
          %s642 = scalar_lea.sflag [#allocation4], %s641
          %s643 = sand.u32 %s189, 1
          %s644 = smul.addr %s643, 4
          %s645 = scalar_lea.vmem [#allocation10], %s644
          %646 = dma.done %s642, 64
        $region72: #{tpu_custom_call.1} parent=67 // pred_fallthru
          _
      $region68: #{tpu_custom_call.1} parent=5 // pred_fallthru
        _
    $region6: #{tpu_custom_call.1} parent=1 // loop_footer
      %s27 = sadd.s32 1, %s23
    $region7: #{tpu_custom_call.1} parent=1 // loop_footer_branch
      %22 = sbr.rel target = $region3
    $region8: #{tpu_custom_call.1} parent=1 // loop_exit
      _
    %647 = vsyncpa [#allocation3], 1
    %s648 = scalar_lea.sflag [#allocation3], 1
    %649 = vsyncpa %s648, 1
    %650 = vsyncpa [#allocation6], 1
    %s651 = scalar_lea.sflag [#allocation6], 1
    %652 = vsyncpa %s651, 1
    %653 = vsyncpa [#allocation9], 1
    %s654 = scalar_lea.sflag [#allocation9], 1
    %655 = vsyncpa %s654, 1
    %656 = vsyncpa [#allocation4], 1
    %s657 = scalar_lea.sflag [#allocation4], 1
    %658 = vsyncpa %s657, 1

</llo_original>
